<compile_context>
chip_gen: v7x
topology: tpu7x:2x2x1
jax: 0.10.0
libtpu: 0.0.40
codegen_flags: <defaults>
</compile_context>

<pallas_src>
import math

import jax
import jax.numpy as jnp
import numpy as np
from jax import lax
from jax.experimental import pallas as pl
from jax.experimental.pallas import tpu as pltpu


VMEM_LIMIT = 48 * 1024 * 1024  # safe across v5e/v6e (128 MiB) and v7x (64 MiB)


# ----------------------------- Pallas kernels ------------------------------ #

def _pw_conv_bn_relu_kernel(x_ref, w_ref, scale_ref, shift_ref, o_ref):
    # 1x1 conv == GEMM over flattened N*H*W rows, fused BN + ReLU.
    # bf16 MXU inputs, f32 accumulation + epilogue, bf16 store (intermediate).
    y = jnp.dot(x_ref[...], w_ref[...], preferred_element_type=jnp.float32)
    y = jnp.maximum(y * scale_ref[...] + shift_ref[...], 0.0)
    o_ref[...] = y.astype(o_ref.dtype)


def _grouped3x3_expand_kernel(h1p_ref, w2_ref, s2_ref, b2_ref,
                              w3_ref, s3_ref, b3_ref, res_ref, o_ref):
    # Fused: grouped 3x3 conv (stride 1, pad 1) + BN + ReLU + 1x1 expand conv
    # + BN + residual add + ReLU.
    #
    # h1p_ref: (1, H+2, W+2, DC) bf16 -- full padded image of one batch element
    #          (block index constant across the row-tile axis -> fetched once).
    # w2_ref : (9, DC, DC) bf16 -- per-tap block-diagonal grouped weights.
    # res_ref/o_ref: (1, TH, W, COUT).
    r = pl.program_id(1)
    _, th, wdim, cout = o_ref.shape
    dc = w2_ref.shape[1]

    row0 = r * th
    # Haloed row slab for this output row tile: (TH+2, W+2, DC).
    slab = h1p_ref[0, pl.ds(row0, th + 2)]

    acc = jnp.zeros((th * wdim, dc), jnp.float32)
    for t in range(9):                      # static unroll over the 9 taps
        kh, kw = t // 3, t % 3
        tap = slab[kh:kh + th, kw:kw + wdim, :].reshape(th * wdim, dc)
        acc = acc + jnp.dot(tap, w2_ref[t], preferred_element_type=jnp.float32)

    h2 = jnp.maximum(acc * s2_ref[...] + b2_ref[...], 0.0)       # f32, stays in VMEM

    y = jnp.dot(h2.astype(w3_ref.dtype), w3_ref[...],
                preferred_element_type=jnp.float32)
    y = y * s3_ref[...] + b3_ref[...]
    res = res_ref[...].reshape(th * wdim, cout).astype(jnp.float32)
    o_ref[...] = jnp.maximum(y + res, 0.0).reshape(1, th, wdim, cout)


# --------------------------- pallas_call wrappers --------------------------- #

def pw_conv_bn_relu(x_flat, w, scale, shift, tm):
    m, cin = x_flat.shape
    cout = w.shape[1]
    grid_m = pl.cdiv(m, tm)
    m_pad = grid_m * tm
    if m_pad != m:                      # handle non-divisible tail by padding
        x_flat = jnp.pad(x_flat, ((0, m_pad - m), (0, 0)))
    out = pl.pallas_call(
        _pw_conv_bn_relu_kernel,
        out_shape=jax.ShapeDtypeStruct((m_pad, cout), jnp.bfloat16),
        grid=(grid_m,),
        in_specs=[
            pl.BlockSpec((tm, cin), lambda i: (i, 0)),
            pl.BlockSpec((cin, cout), lambda i: (0, 0)),
            pl.BlockSpec((1, cout), lambda i: (0, 0)),
            pl.BlockSpec((1, cout), lambda i: (0, 0)),
        ],
        out_specs=pl.BlockSpec((tm, cout), lambda i: (i, 0)),
        compiler_params=pltpu.CompilerParams(
            dimension_semantics=("parallel",),
            vmem_limit_bytes=VMEM_LIMIT),
    )(x_flat, w, scale, shift)
    return out[:m] if m_pad != m else out


def grouped3x3_expand_bn_add_relu(h1_pad, w2_taps, s2, b2, w3, s3, b3,
                                  res_nhwc, th):
    n, hp2, wp2, dc = h1_pad.shape
    h, w = hp2 - 2, wp2 - 2
    cout = w3.shape[1]
    assert h % th == 0
    return pl.pallas_call(
        _grouped3x3_expand_kernel,
        out_shape=jax.ShapeDtypeStruct((n, h, w, cout), jnp.float32),
        grid=(n, h // th),
        in_specs=[
            pl.BlockSpec((1, hp2, wp2, dc), lambda i, j: (i, 0, 0, 0)),
            pl.BlockSpec((9, dc, dc), lambda i, j: (0, 0, 0)),
            pl.BlockSpec((1, dc), lambda i, j: (0, 0)),
            pl.BlockSpec((1, dc), lambda i, j: (0, 0)),
            pl.BlockSpec((dc, cout), lambda i, j: (0, 0)),
            pl.BlockSpec((1, cout), lambda i, j: (0, 0)),
            pl.BlockSpec((1, cout), lambda i, j: (0, 0)),
            pl.BlockSpec((1, th, w, cout), lambda i, j: (i, j, 0, 0)),
        ],
        out_specs=pl.BlockSpec((1, th, w, cout), lambda i, j: (i, j, 0, 0)),
        compiler_params=pltpu.CompilerParams(
            dimension_semantics=("parallel", "parallel"),
            vmem_limit_bytes=VMEM_LIMIT),
    )(h1_pad, w2_taps, s2, b2, w3, s3, b3, res_nhwc)


# ------------------------------ tile heuristics ------------------------------ #

def _pick_tm(m, target=512, min_steps=4):
    # Largest row tile <= target while keeping >= min_steps grid steps.
    tm = min(target, max(8, m // min_steps))
    return max(8, (tm // 8) * 8)


def _pick_spatial_tile(n, h, w, target_rows=128, min_steps=4):
    divs = [d for d in range(1, h + 1) if h % d == 0]
    cands = [d for d in divs if d * w <= target_rows] or [1]
    th = max(cands)
    # Keep enough grid steps for megacore sharding (matters on v7x: 2 TCs).
    while th > 1 and n * (h // th) < min_steps:
        smaller = [d for d in divs if d < th]
        if not smaller:
            break
        th = max(smaller)
    return th


# ------------------------------ full forward -------------------------------- #

def resnext_bottleneck_forward(x_nchw, params, stride=1):
    """ResNeXtBottleneck.forward with downsample=None (identity residual)."""
    (w1, s1, b1, w2_taps, s2, b2, w3, s3, b3) = params
    n, cin, h, w = x_nchw.shape
    dc = w1.shape[1]
    cout = w3.shape[1]

    # TODO(synk): stride != 1 and the downsample branch are not implemented;
    # identity residual requires stride == 1 and inplanes == planes * 4.
    assert stride == 1 and cin == cout, \
        "identity residual requires stride=1 and inplanes == planes*4"
    # TODO(synk): for D*C > 128 replace the block-diagonal dense per-tap
    # weights with a per-group (rows, C, D) x (C, D, D) contraction in-kernel.
    assert dc <= 128, "block-diagonal dense grouped weights gated to D*C <= 128"

    # TODO(synk): in a full model keep NHWC end-to-end to avoid these transposes.
    x_nhwc = jnp.transpose(x_nchw, (0, 2, 3, 1)).astype(jnp.bfloat16)   # NHWC bf16
    m = n * h * w
    x_flat = x_nhwc.reshape(m, cin)

    # 1) conv_reduce + bn_reduce + relu  (flat GEMM, bf16 intermediate)
    tm = _pick_tm(m)
    h1 = pw_conv_bn_relu(x_flat, w1, s1, b1, tm)                        # (M, DC) bf16

    # zero padding for the 3x3 conv (single cheap XLA pass over the narrowest tensor)
    h1_pad = jnp.pad(h1.reshape(n, h, w, dc), ((0, 0), (1, 1), (1, 1), (0, 0)))

    # 2+3) grouped 3x3 conv + bn + relu + expand 1x1 + bn + residual + relu (fused)
    th = _pick_spatial_tile(n, h, w)
    out_nhwc = grouped3x3_expand_bn_add_relu(
        h1_pad, w2_taps, s2, b2, w3, s3, b3, x_nhwc, th)                # (N,H,W,COUT) f32

    return jnp.transpose(out_nhwc, (0, 3, 1, 2))                        # back to NCHW


# ------------------------- deterministic parameters -------------------------- #

def init_params(key, inplanes, planes, cardinality, base_width):
    d = int(math.floor(planes * (base_width / 64.0)))
    c = cardinality
    dc = d * c
    cout = planes * 4
    ks = jax.random.split(key, 15)

    def uniform_fan(k, shape, fan_in):
        bound = 1.0 / math.sqrt(fan_in)
        return jax.random.uniform(k, shape, jnp.float32, -bound, bound)

    # conv_reduce: torch (DC, inplanes, 1, 1) -> (inplanes, DC) matmul weight
    w1 = uniform_fan(ks[0], (inplanes, dc), inplanes).astype(jnp.bfloat16)
    # conv_conv (grouped): torch (DC, D, 3, 3)
    w2_t = uniform_fan(ks[1], (dc, d, 3, 3), d * 9).astype(jnp.bfloat16)
    # conv_expand: torch (cout, DC, 1, 1) -> (DC, cout)
    w3 = uniform_fan(ks[2], (dc, cout), dc).astype(jnp.bfloat16)

    def bn_fold(kg, kb, km, kv, ch):
        gamma = 1.0 + 0.1 * jax.random.normal(kg, (ch,), jnp.float32)
        beta = 0.1 * jax.random.normal(kb, (ch,), jnp.float32)
        mean = 0.1 * jax.random.normal(km, (ch,), jnp.float32)
        var = 1.0 + 0.1 * jax.random.uniform(kv, (ch,), jnp.float32)
        eps = 1e-5
        scale = gamma / jnp.sqrt(var + eps)
        shift = beta - mean * scale
        return scale.reshape(1, ch), shift.reshape(1, ch)

    s1, b1 = bn_fold(ks[3], ks[4], ks[5], ks[6], dc)
    s2, b2 = bn_fold(ks[7], ks[8], ks[9], ks[10], dc)
    s3, b3 = bn_fold(ks[11], ks[12], ks[13], ks[14], cout)

    # Per-tap dense block-diagonal grouped weights (bf16); valid while DC <= 128.
    w2_dense = jnp.zeros((3, 3, dc, dc), jnp.bfloat16)
    for g in range(c):
        blk = w2_t[g * d:(g + 1) * d]                 # (D_out, D_in, 3, 3)
        w2_dense = w2_dense.at[:, :, g * d:(g + 1) * d, g * d:(g + 1) * d].set(
            jnp.transpose(blk, (2, 3, 1, 0)))         # -> (3, 3, D_in, D_out)
    w2_taps = w2_dense.reshape(9, dc, dc)

    kernel_params = (w1, s1, b1, w2_taps, s2, b2, w3, s3, b3)
    ref_params = (w1.astype(jnp.float32), s1, b1, w2_t.astype(jnp.float32),
                  s2, b2, w3.astype(jnp.float32), s3, b3)
    return kernel_params, ref_params


# ------------------------------ pure-JAX reference --------------------------- #

def reference_forward(x_nchw, w1, s1, b1, w2_t, s2, b2, w3, s3, b3,
                      cardinality, stride=1):
    x = jnp.transpose(x_nchw, (0, 2, 3, 1))
    # Match the kernel's bf16 input rounding at the boundary; compute in f32.
    x = x.astype(jnp.bfloat16).astype(jnp.float32)
    hp = jax.lax.Precision.HIGHEST
    h1 = jnp.maximum(
        jnp.einsum('nhwc,cd->nhwd', x, w1, precision=hp)
        * s1.reshape(-1) + b1.reshape(-1), 0.0)
    rhs = jnp.transpose(w2_t, (2, 3, 1, 0))           # HWIO, I = D per group
    h2 = lax.conv_general_dilated(
        h1, rhs, (stride, stride), ((1, 1), (1, 1)),
        dimension_numbers=('NHWC', 'HWIO', 'NHWC'),
        feature_group_count=cardinality, precision=hp)
    h2 = jnp.maximum(h2 * s2.reshape(-1) + b2.reshape(-1), 0.0)
    h3 = (jnp.einsum('nhwc,cd->nhwd', h2, w3, precision=hp)
          * s3.reshape(-1) + b3.reshape(-1))
    out = jnp.maximum(h3 + x, 0.0)
    return jnp.transpose(out, (0, 3, 1, 2))


# ------------------------------------ main ----------------------------------- #

if __name__ == "__main__":
    # planes=8, cardinality=4, base_width=64 -> D=8, D*C=32, planes*4=32=inplanes
    # (identity residual valid).  Spatial 16x16, batch 2.
    N, H, W = 2, 16, 16
    planes, cardinality, base_width = 8, 4, 64
    inplanes = planes * 4

    key = jax.random.PRNGKey(0)
    kx, kp = jax.random.split(key)
    x = jax.random.normal(kx, (N, inplanes, H, W), jnp.float32)   # NCHW, like PyTorch

    kernel_params, ref_params = init_params(kp, inplanes, planes,
                                            cardinality, base_width)

    out = resnext_bottleneck_forward(x, kernel_params, stride=1)
    out = jax.block_until_ready(out)

    ref = reference_forward(x, *ref_params, cardinality, stride=1)
    np.testing.assert_allclose(np.asarray(out), np.asarray(ref),
                               rtol=2e-2, atol=2e-2)

    print("KERNEL_OK")
</pallas_src>

<mosaic_0001>
module attributes {stable_mosaic.version = 11 : i64} {
  func.func @_pw_conv_bn_relu_kernel(%arg0: i32, %arg1: memref<128x32xbf16, #tpu.memory_space<vmem>>, %arg2: memref<32x32xbf16, #tpu.memory_space<vmem>>, %arg3: memref<1x32xf32, #tpu.memory_space<vmem>>, %arg4: memref<1x32xf32, #tpu.memory_space<vmem>>, %arg5: memref<128x32xbf16, #tpu.memory_space<vmem>>) attributes {dimension_semantics = [#tpu.dimension_semantics<parallel>], iteration_bounds = array<i64: 4>, scalar_prefetch = 0 : i64, scratch_operands = 0 : i64, tpu.core_type = #tpu.core_type<tc>, window_params = [{transform_indices = @transform_0, window_bounds = array<i64: 128, 32>}, {pipeline_mode = #tpu.pipeline_mode<synchronous>, transform_indices = @transform_1, window_bounds = array<i64: 32, 32>}, {pipeline_mode = #tpu.pipeline_mode<synchronous>, transform_indices = @transform_2, window_bounds = array<i64: 1, 32>}, {pipeline_mode = #tpu.pipeline_mode<synchronous>, transform_indices = @transform_3, window_bounds = array<i64: 1, 32>}, {transform_indices = @transform_4, window_bounds = array<i64: 128, 32>}]} {
    %c0 = arith.constant 0 : index
    %c0_0 = arith.constant 0 : index
    %0 = vector.load %arg1[%c0, %c0_0] : memref<128x32xbf16, #tpu.memory_space<vmem>>, vector<128x32xbf16>
    %c0_1 = arith.constant 0 : index
    %c0_2 = arith.constant 0 : index
    %1 = vector.load %arg2[%c0_1, %c0_2] : memref<32x32xbf16, #tpu.memory_space<vmem>>, vector<32x32xbf16>
    %cst = arith.constant dense<0.000000e+00> : vector<128x32xf32>
    %2 = tpu.matmul %0, %1, %cst {dimension_numbers = #tpu.dot_dimension_numbers<[1], [0], [0], [1], [0, 0, 1, 1], [], []>} : vector<128x32xbf16>, vector<32x32xbf16>, vector<128x32xf32> -> vector<128x32xf32>
    %c0_3 = arith.constant 0 : index
    %c0_4 = arith.constant 0 : index
    %3 = vector.load %arg3[%c0_3, %c0_4] : memref<1x32xf32, #tpu.memory_space<vmem>>, vector<1x32xf32>
    %4 = vector.broadcast %3 : vector<1x32xf32> to vector<128x32xf32>
    %5 = arith.mulf %2, %4 : vector<128x32xf32>
    %c0_5 = arith.constant 0 : index
    %c0_6 = arith.constant 0 : index
    %6 = vector.load %arg4[%c0_5, %c0_6] : memref<1x32xf32, #tpu.memory_space<vmem>>, vector<1x32xf32>
    %7 = vector.broadcast %6 : vector<1x32xf32> to vector<128x32xf32>
    %8 = arith.addf %5, %7 : vector<128x32xf32>
    %cst_7 = arith.constant 0.000000e+00 : f32
    %9 = vector.broadcast %cst_7 : f32 to vector<128x32xf32>
    %10 = arith.maximumf %8, %9 : vector<128x32xf32>
    %11 = arith.truncf %10 : vector<128x32xf32> to vector<128x32xbf16>
    %c0_8 = arith.constant 0 : index
    %c0_9 = arith.constant 0 : index
    %12 = vector.load %arg5[%c0_8, %c0_9] : memref<128x32xbf16, #tpu.memory_space<vmem>>, vector<128x32xbf16>
    tpu.vector_store %arg5[%c0_8, %c0_9], %11 {strides = array<i32>} : memref<128x32xbf16, #tpu.memory_space<vmem>>, vector<128x32xbf16>,
    return
  }
  func.func @transform_0(%arg0: i32) -> (i32, i32) {
    %c0_i32 = arith.constant 0 : i32
    %c0_i32_0 = arith.constant 0 : i32
    return %arg0, %c0_i32 : i32, i32
  }
  func.func @transform_1(%arg0: i32) -> (i32, i32) {
    %c0_i32 = arith.constant 0 : i32
    %c0_i32_0 = arith.constant 0 : i32
    %c0_i32_1 = arith.constant 0 : i32
    return %c0_i32, %c0_i32_0 : i32, i32
  }
  func.func @transform_2(%arg0: i32) -> (i32, i32) {
    %c0_i32 = arith.constant 0 : i32
    %c0_i32_0 = arith.constant 0 : i32
    %c0_i32_1 = arith.constant 0 : i32
    return %c0_i32, %c0_i32_0 : i32, i32
  }
  func.func @transform_3(%arg0: i32) -> (i32, i32) {
    %c0_i32 = arith.constant 0 : i32
    %c0_i32_0 = arith.constant 0 : i32
    %c0_i32_1 = arith.constant 0 : i32
    return %c0_i32, %c0_i32_0 : i32, i32
  }
  func.func @transform_4(%arg0: i32) -> (i32, i32) {
    %c0_i32 = arith.constant 0 : i32
    %c0_i32_0 = arith.constant 0 : i32
    return %arg0, %c0_i32 : i32, i32
  }
}

</mosaic_0001>

<llo_original>
// kernel: tpu_custom_call.1
$region0: #{tpu_custom_call.1}
  #allocation0 [shape = 'u32[]', space=smem, size = 0x4, offset = 0x4, fixed_abs, tag = 'smem constant byte address 0x4 - core index']
  #allocation1 [shape = 'u32[144,128]{1,0:T(1,128)}', space=vmem, size = 0x12000, scoped, tag = 'internal scratch']
  %s0 = inlined_call_operand.vmem [shape: bf16[512,32], index: 0, kind: input, shape index: {}]
  %s1 = inlined_call_operand.vmem [shape: bf16[32,32], index: 1, kind: input, shape index: {}]
  %s2 = inlined_call_operand.vmem [shape: f32[1,32], index: 2, kind: input, shape index: {}]
  %s3 = inlined_call_operand.vmem [shape: f32[1,32], index: 3, kind: input, shape index: {}]
  %s4 = inlined_call_operand.vmem [shape: bf16[512,32], index: 4, kind: output, shape index: {}]
  %s5 = sld [smem:[#allocation0]]
  $region49: #{tpu_custom_call.1} parent=0
    _
  %s7 = ssub.s32 1, %s5
  %s8 = scalar_select 0, %s7, %s5
  loop: start=0, step=1, limit=6
  $region2: #{tpu_custom_call.1} parent=0 // loop_pre_header
    _
  $region3: #{tpu_custom_call.1} parent=0 // loop_header
    %s10 = sphi 0, %s14
    %p11 = scmp.ge.s32.totalorder %s10, 6
    %s20 = sphi 0, %s22
    %s23 = sphi 0, %s20
    %s24 = sphi 0, %s23
    %s40 = sphi 0, %s24
    %s44 = sphi 0, %s44
    %s46 = sphi 0, %s44
    %s47 = sphi 0, %s46
    %s61 = sphi 0, %s47
    %s65 = sphi 0, %s65
    %s67 = sphi 0, %s65
    %s68 = sphi 0, %s67
    %s82 = sphi 0, %s68
    %s86 = sphi 0, %s86
    %s88 = sphi 0, %s86
    %s89 = sphi 0, %s88
    %s103 = sphi 0, %s89
    %s109 = sphi 0, %s111
    %s112 = sphi 0, %s109
    %s113 = sphi 0, %s112
    %s129 = sphi 0, %s113
  $region4: #{tpu_custom_call.1} parent=0 // loop_header_branch
    %13 = sbr.rel (%p11) target = $region8
  $region5: #{tpu_custom_call.1} parent=0 // loop_body
    %s15 = ssub.s32 %s10, 1
    %s16 = ssub.s32 %s10, 2
    %s17 = sadd.s32 %s10, 1
    %s18 = ssub.s32 %s10, %s17
    %p19 = scmp.eq.s32.totalorder %s18, 0
    %s21 = sadd.s32 %s20, 1
    %s22 = scalar_select %p19, %s20, %s21
    %p25 = pneg %p19
    %p26 = scmp.eq.s32.totalorder %s10, 3
    %p27 = por %p25, %p26
    %p28 = scmp.ne.s32.totalorder %s20, %s23
    %p29 = scmp.eq.s32.totalorder %s10, 0
    %p30 = por %p28, %p29
    %p31 = scmp.ne.s32.totalorder %s20, %s23
    %p32 = scmp.eq.s32.totalorder %s15, 3
    %p33 = por %p31, %p32
    %p34 = scmp.ne.s32.totalorder %s23, %s24
    %p35 = scmp.eq.s32.totalorder %s15, 0
    %p36 = por %p34, %p35
    %p37 = scmp.ne.s32.totalorder %s23, %s24
    %p38 = scmp.eq.s32.totalorder %s16, 3
    %p39 = por %p37, %p38
    %p41 = scmp.ne.s32.totalorder %s24, %s40
    %p42 = scmp.eq.s32.totalorder %s16, 0
    %p43 = por %p41, %p42
    %s45 = sadd.s32 %s44, 1
    %p48 = scmp.eq.s32.totalorder %s10, 3
    %p49 = scmp.ne.s32.totalorder %s44, %s46
    %p50 = scmp.eq.s32.totalorder %s10, 0
    %p51 = por %p49, %p50
    %p52 = scmp.ne.s32.totalorder %s44, %s46
    %p53 = scmp.eq.s32.totalorder %s15, 3
    %p54 = por %p52, %p53
    %p55 = scmp.ne.s32.totalorder %s46, %s47
    %p56 = scmp.eq.s32.totalorder %s15, 0
    %p57 = por %p55, %p56
    %p58 = scmp.ne.s32.totalorder %s46, %s47
    %p59 = scmp.eq.s32.totalorder %s16, 3
    %p60 = por %p58, %p59
    %p62 = scmp.ne.s32.totalorder %s47, %s61
    %p63 = scmp.eq.s32.totalorder %s16, 0
    %p64 = por %p62, %p63
    %s66 = sadd.s32 %s65, 1
    %p69 = scmp.eq.s32.totalorder %s10, 3
    %p70 = scmp.ne.s32.totalorder %s65, %s67
    %p71 = scmp.eq.s32.totalorder %s10, 0
    %p72 = por %p70, %p71
    %p73 = scmp.ne.s32.totalorder %s65, %s67
    %p74 = scmp.eq.s32.totalorder %s15, 3
    %p75 = por %p73, %p74
    %p76 = scmp.ne.s32.totalorder %s67, %s68
    %p77 = scmp.eq.s32.totalorder %s15, 0
    %p78 = por %p76, %p77
    %p79 = scmp.ne.s32.totalorder %s67, %s68
    %p80 = scmp.eq.s32.totalorder %s16, 3
    %p81 = por %p79, %p80
    %p83 = scmp.ne.s32.totalorder %s68, %s82
    %p84 = scmp.eq.s32.totalorder %s16, 0
    %p85 = por %p83, %p84
    %s87 = sadd.s32 %s86, 1
    %p90 = scmp.eq.s32.totalorder %s10, 3
    %p91 = scmp.ne.s32.totalorder %s86, %s88
    %p92 = scmp.eq.s32.totalorder %s10, 0
    %p93 = por %p91, %p92
    %p94 = scmp.ne.s32.totalorder %s86, %s88
    %p95 = scmp.eq.s32.totalorder %s15, 3
    %p96 = por %p94, %p95
    %p97 = scmp.ne.s32.totalorder %s88, %s89
    %p98 = scmp.eq.s32.totalorder %s15, 0
    %p99 = por %p97, %p98
    %p100 = scmp.ne.s32.totalorder %s88, %s89
    %p101 = scmp.eq.s32.totalorder %s16, 3
    %p102 = por %p100, %p101
    %p104 = scmp.ne.s32.totalorder %s89, %s103
    %p105 = scmp.eq.s32.totalorder %s16, 0
    %p106 = por %p104, %p105
    %s107 = ssub.s32 %s10, %s17
    %p108 = scmp.eq.s32.totalorder %s107, 0
    %s110 = sadd.s32 %s109, 1
    %s111 = scalar_select %p108, %s109, %s110
    %p114 = pneg %p108
    %p115 = scmp.eq.s32.totalorder %s10, 3
    %p116 = por %p114, %p115
    %p117 = scmp.ne.s32.totalorder %s109, %s112
    %p118 = scmp.eq.s32.totalorder %s10, 0
    %p119 = por %p117, %p118
    %p120 = scmp.ne.s32.totalorder %s109, %s112
    %p121 = scmp.eq.s32.totalorder %s15, 3
    %p122 = por %p120, %p121
    %p123 = scmp.ne.s32.totalorder %s112, %s113
    %p124 = scmp.eq.s32.totalorder %s15, 0
    %p125 = por %p123, %p124
    %p126 = scmp.ne.s32.totalorder %s112, %s113
    %p127 = scmp.eq.s32.totalorder %s16, 3
    %p128 = por %p126, %p127
    %p130 = scmp.ne.s32.totalorder %s113, %s129
    %p131 = scmp.eq.s32.totalorder %s16, 0
    %p132 = por %p130, %p131
    %p133 = scmp.le.s32.totalorder 1, %s10
    %p134 = scmp.lt.s32.totalorder %s10, 5
    %p135 = pnand %p133, %p134
    %p136 = pneg %p135
    // Predicated region
    $region9: #{tpu_custom_call.1} parent=5 // pred_check
      _
    $region10: #{tpu_custom_call.1} parent=5 // pred_check_branch
      %138 = sbr.rel (%p135) target = $region12
    $region11: #{tpu_custom_call.1} parent=5 // pred_region
      %s139 = ssub.s32 %s10, 1
      // Predicated region
      $region13: #{tpu_custom_call.1} parent=11 // pred_check
        %p140 = pneg %p57
      $region14: #{tpu_custom_call.1} parent=11 // pred_check_branch
        %142 = sbr.rel (%p140) target = $region16
      $region15: #{tpu_custom_call.1} parent=11 // pred_region
        _
      $region16: #{tpu_custom_call.1} parent=11 // pred_fallthru
        _
      // Predicated region
      $region17: #{tpu_custom_call.1} parent=11 // pred_check
        %p143 = pneg %p78
      $region18: #{tpu_custom_call.1} parent=11 // pred_check_branch
        %145 = sbr.rel (%p143) target = $region20
      $region19: #{tpu_custom_call.1} parent=11 // pred_region
        _
      $region20: #{tpu_custom_call.1} parent=11 // pred_fallthru
        _
      // Predicated region
      $region21: #{tpu_custom_call.1} parent=11 // pred_check
        %p146 = pneg %p99
      $region22: #{tpu_custom_call.1} parent=11 // pred_check_branch
        %148 = sbr.rel (%p146) target = $region24
      $region23: #{tpu_custom_call.1} parent=11 // pred_region
        _
      $region24: #{tpu_custom_call.1} parent=11 // pred_fallthru
        _
    $region12: #{tpu_custom_call.1} parent=5 // pred_fallthru
      _
    %p149 = scmp.lt.s32.totalorder %s10, 4
    // Predicated region
    $region25: #{tpu_custom_call.1} parent=5 // pred_check
      %p150 = pneg %p149
    $region26: #{tpu_custom_call.1} parent=5 // pred_check_branch
      %152 = sbr.rel (%p150) target = $region28
    $region27: #{tpu_custom_call.1} parent=5 // pred_region
      // Predicated region
      $region29: #{tpu_custom_call.1} parent=27 // pred_check
        %p153 = pneg %p30
      $region30: #{tpu_custom_call.1} parent=27 // pred_check_branch
        %155 = sbr.rel (%p153) target = $region32
      $region31: #{tpu_custom_call.1} parent=27 // pred_region
        %s156 = smul.u32 16, %s10
        %p157 = scmp.lt.s32.totalorder %s156, 63
        %s158 = scalar_select %p157, %s156, 63
        %s159 = smul.addr %s158, 4
        %s160 = scalar_lea.vmem %s0, %s159
        %s161 = smul.u32 16, %s10
      $region32: #{tpu_custom_call.1} parent=27 // pred_fallthru
        _
    $region28: #{tpu_custom_call.1} parent=5 // pred_fallthru
      _
    %p162 = scmp.le.s32.totalorder 1, %s10
    %p163 = scmp.lt.s32.totalorder %s10, 5
    %p164 = pnand %p162, %p163
    %p165 = pneg %p164
    // Predicated region
    $region33: #{tpu_custom_call.1} parent=5 // pred_check
      _
    $region34: #{tpu_custom_call.1} parent=5 // pred_check_branch
      %167 = sbr.rel (%p164) target = $region36
    $region35: #{tpu_custom_call.1} parent=5 // pred_region
      %s168 = ssub.s32 %s10, 1
      %s169 = smul.u32 16, %s15
      %p170 = scmp.lt.s32.totalorder %s169, 63
      %s171 = scalar_select %p170, %s169, 63
      %s172 = smul.addr %s171, 4
      %s173 = scalar_lea.vmem %s0, %s172
      %p174 = pneg %p36
      %p175 = pneg %p33
      %p176 = pneg %p57
      %p177 = pneg %p54
      %p178 = pneg %p78
      %p179 = pneg %p75
      %p180 = pneg %p99
      %p181 = pneg %p96
      %p182 = pneg %p125
      %p183 = pneg %p122
      %s184 = smul.u32 16, %s15
      %p185 = scmp.lt.s32.totalorder %s184, 63
      %s186 = scalar_select %p185, %s184, 63
      %s187 = smul.addr %s186, 4
      %s188 = scalar_lea.vmem %s4, %s187
      %s189 = smul.u32 16, %s15
      %p190 = scmp.lt.s32.totalorder %s189, 63
      %s191 = scalar_select %p190, %s189, 63
      %s192 = smul.addr %s191, 4
      %s193 = scalar_lea.vmem %s0, %s192
      %s194 = smul.u32 16, %s15
      %s195 = smul.u32 16, %s15
      %p196 = scmp.lt.s32.totalorder %s195, 63
      %s197 = scalar_select %p196, %s195, 63
      %s198 = smul.addr %s197, 4
      %s199 = scalar_lea.vmem %s4, %s198
      %s200 = smul.u32 16, %s15
      %v202 = vld [vmem:[%s193] sm:$0xf]
      %v203 = vld [vmem:[%s193 + $0x4] sm:$0xf]
      %v204 = vld [vmem:[%s193 + $0x8] sm:$0xf]
      %v205 = vld [vmem:[%s193 + $0xc] sm:$0xf]
      %v206 = vld [vmem:[%s193 + $0x10] sm:$0xf]
      %v207 = vld [vmem:[%s193 + $0x14] sm:$0xf]
      %v208 = vld [vmem:[%s193 + $0x18] sm:$0xf]
      %v209 = vld [vmem:[%s193 + $0x1c] sm:$0xf]
      %v210 = vld [vmem:[%s193 + $0x20] sm:$0xf]
      %v211 = vld [vmem:[%s193 + $0x24] sm:$0xf]
      %v212 = vld [vmem:[%s193 + $0x28] sm:$0xf]
      %v213 = vld [vmem:[%s193 + $0x2c] sm:$0xf]
      %v214 = vld [vmem:[%s193 + $0x30] sm:$0xf]
      %v215 = vld [vmem:[%s193 + $0x34] sm:$0xf]
      %v216 = vld [vmem:[%s193 + $0x38] sm:$0xf]
      %v217 = vld [vmem:[%s193 + $0x3c] sm:$0xf]
      %v218 = vld [vmem:[%s1] sm:$0xf]
      %v219 = vld [vmem:[%s1 + $0x4] sm:$0xf]
      %v220 = vld [vmem:[%s1 + $0x8] sm:$0xf]
      %v221 = vld [vmem:[%s1 + $0xc] sm:$0xf]
      %v238 = vunpack.c.l.b16 %v202
      %v239 = vunpack.c.l.b16 %v203
      %v240 = vunpack.c.l.b16 %v204
      %v241 = vunpack.c.l.b16 %v205
      %v242 = vunpack.c.l.b16 %v206
      %v243 = vunpack.c.l.b16 %v207
      %v244 = vunpack.c.l.b16 %v208
      %v245 = vunpack.c.l.b16 %v209
      %v246 = vunpack.c.l.b16 %v210
      %v247 = vunpack.c.l.b16 %v211
      %v248 = vunpack.c.l.b16 %v212
      %v249 = vunpack.c.l.b16 %v213
      %v250 = vunpack.c.l.b16 %v214
      %v251 = vunpack.c.l.b16 %v215
      %v252 = vunpack.c.l.b16 %v216
      %v253 = vunpack.c.l.b16 %v217
      %v254 = vpack.c.b16 %v239, %v238
      %v255 = vpack.c.b16 %v241, %v240
      %v256 = vpack.c.b16 %v243, %v242
      %v257 = vpack.c.b16 %v245, %v244
      %v258 = vpack.c.b16 %v247, %v246
      %v259 = vpack.c.b16 %v249, %v248
      %v260 = vpack.c.b16 %v251, %v250
      %v261 = vpack.c.b16 %v253, %v252
      %v266 = vunpack.c.l.b16 %v218
      %v267 = vunpack.c.l.b16 %v219
      %v268 = vunpack.c.l.b16 %v220
      %v269 = vunpack.c.l.b16 %v221
      %v270 = vpack.c.b16 %v267, %v266
      %v271 = vpack.c.b16 %v269, %v268
      %vm274 = vcmask 261120
      %v276 = vsel %vm274, %v254, 0
      %v279 = vsel %vm274, %v255, 0
      %v282 = vsel %vm274, %v256, 0
      %v285 = vsel %vm274, %v257, 0
      %v288 = vsel %vm274, %v258, 0
      %v291 = vsel %vm274, %v259, 0
      %v294 = vsel %vm274, %v260, 0
      %v297 = vsel %vm274, %v261, 0
      %299 = vmatprep.subr.bf16.mxu0 0
      %300 = vmatpush1.bf16.msra.mxu0 %v270
      %301 = vmatprep.subr.bf16.mxu0 0
      %302 = vmatpush1.bf16.msra.mxu0 %v271
      %303 = vmatprep.subr.bf16.mxu0 0
      %304 = vmatpush1.bf16.msra.mxu0 0
      %305 = vmatprep.subr.bf16.mxu0 0
      %306 = vmatpush1.bf16.msra.mxu0 0
      %307 = vmatprep.subr.bf16.mxu0 0
      %308 = vmatpush1.bf16.msra.mxu0 0
      %309 = vmatprep.subr.bf16.mxu0 0
      %310 = vmatpush1.bf16.msra.mxu0 0
      %311 = vmatprep.subr.bf16.mxu0 0
      %312 = vmatpush1.bf16.msra.mxu0 0
      %313 = vmatprep.subr.bf16.mxu0 0
      %314 = vmatpush1.bf16.msra.mxu0 0
      %315 = vmatprep.subr.bf16.mxu0 0
      %316 = vmatpush1.bf16.msra.mxu0 0
      %317 = vmatprep.subr.bf16.mxu0 0
      %318 = vmatpush1.bf16.msra.mxu0 0
      %319 = vmatprep.subr.bf16.mxu0 0
      %320 = vmatpush1.bf16.msra.mxu0 0
      %321 = vmatprep.subr.bf16.mxu0 0
      %322 = vmatpush1.bf16.msra.mxu0 0
      %323 = vmatprep.subr.bf16.mxu0 0
      %324 = vmatpush1.bf16.msra.mxu0 0
      %325 = vmatprep.subr.bf16.mxu0 0
      %326 = vmatpush1.bf16.msra.mxu0 0
      %327 = vmatprep.subr.bf16.mxu0 0
      %328 = vmatpush1.bf16.msra.mxu0 0
      %329 = vmatprep.subr.bf16.mxu0 0
      %330 = vmatpush1.bf16.msra.mxu0 0
      %331 = vmatprep.mubr.bf16.mxu0 0
      %332 = vmatmul.mubr.bf16.gmra.mrb[0].mxu0 %v276
      %v333 = vpop.f32.mrb[0].mxu0
      %v334 = vadd.f32 0.0, %v333
      %v335 = vpop.f32.mrb[0].mxu0
      %v336 = vpop.f32.mrb[0].mxu0
      %v337 = vadd.f32 0.0, %v336
      %v338 = vpop.f32.mrb[0].mxu0
      %339 = vmatprep.mubr.bf16.mxu0 0
      %340 = vmatmul.mubr.bf16.gmra.mrb[0].mxu0 %v279
      %v341 = vpop.f32.mrb[0].mxu0
      %v342 = vadd.f32 0.0, %v341
      %v343 = vpop.f32.mrb[0].mxu0
      %v344 = vpop.f32.mrb[0].mxu0
      %v345 = vadd.f32 0.0, %v344
      %v346 = vpop.f32.mrb[0].mxu0
      %347 = vmatprep.mubr.bf16.mxu0 0
      %348 = vmatmul.mubr.bf16.gmra.mrb[0].mxu0 %v282
      %v349 = vpop.f32.mrb[0].mxu0
      %v350 = vadd.f32 0.0, %v349
      %v351 = vpop.f32.mrb[0].mxu0
      %v352 = vpop.f32.mrb[0].mxu0
      %v353 = vadd.f32 0.0, %v352
      %v354 = vpop.f32.mrb[0].mxu0
      %355 = vmatprep.mubr.bf16.mxu0 0
      %356 = vmatmul.mubr.bf16.gmra.mrb[0].mxu0 %v285
      %v357 = vpop.f32.mrb[0].mxu0
      %v358 = vadd.f32 0.0, %v357
      %v359 = vpop.f32.mrb[0].mxu0
      %v360 = vpop.f32.mrb[0].mxu0
      %v361 = vadd.f32 0.0, %v360
      %v362 = vpop.f32.mrb[0].mxu0
      %363 = vmatprep.mubr.bf16.mxu0 0
      %364 = vmatmul.mubr.bf16.gmra.mrb[0].mxu0 %v288
      %v365 = vpop.f32.mrb[0].mxu0
      %v366 = vadd.f32 0.0, %v365
      %v367 = vpop.f32.mrb[0].mxu0
      %v368 = vpop.f32.mrb[0].mxu0
      %v369 = vadd.f32 0.0, %v368
      %v370 = vpop.f32.mrb[0].mxu0
      %371 = vmatprep.mubr.bf16.mxu0 0
      %372 = vmatmul.mubr.bf16.gmra.mrb[0].mxu0 %v291
      %v373 = vpop.f32.mrb[0].mxu0
      %v374 = vadd.f32 0.0, %v373
      %v375 = vpop.f32.mrb[0].mxu0
      %v376 = vpop.f32.mrb[0].mxu0
      %v377 = vadd.f32 0.0, %v376
      %v378 = vpop.f32.mrb[0].mxu0
      %379 = vmatprep.mubr.bf16.mxu0 0
      %380 = vmatmul.mubr.bf16.gmra.mrb[0].mxu0 %v294
      %v381 = vpop.f32.mrb[0].mxu0
      %v382 = vadd.f32 0.0, %v381
      %v383 = vpop.f32.mrb[0].mxu0
      %v384 = vpop.f32.mrb[0].mxu0
      %v385 = vadd.f32 0.0, %v384
      %v386 = vpop.f32.mrb[0].mxu0
      %387 = vmatprep.mubr.bf16.mxu0 0
      %388 = vmatmul.mubr.bf16.gmra.mrb[0].mxu0 %v297
      %v389 = vpop.f32.mrb[0].mxu0
      %v390 = vadd.f32 0.0, %v389
      %v391 = vpop.f32.mrb[0].mxu0
      %v392 = vpop.f32.mrb[0].mxu0
      %v393 = vadd.f32 0.0, %v392
      %v394 = vpop.f32.mrb[0].mxu0
      %395 = vdwg.mxu0
      %v396 = vld [vmem:[%s2] sm:$0x1]
      %v398 = vlaneseq
      %v399 = vshrl.u32 %v398, 7
      %v400 = vsub.s32 0, %v399
      %v401 = vrot.slane %v396, %v400
      %v403 = vmul.f32 %v334, %v401
      %v404 = vmul.f32 %v337, %v401
      %v405 = vmul.f32 %v342, %v401
      %v406 = vmul.f32 %v345, %v401
      %v407 = vmul.f32 %v350, %v401
      %v408 = vmul.f32 %v353, %v401
      %v409 = vmul.f32 %v358, %v401
      %v410 = vmul.f32 %v361, %v401
      %v411 = vmul.f32 %v366, %v401
      %v412 = vmul.f32 %v369, %v401
      %v413 = vmul.f32 %v374, %v401
      %v414 = vmul.f32 %v377, %v401
      %v415 = vmul.f32 %v382, %v401
      %v416 = vmul.f32 %v385, %v401
      %v417 = vmul.f32 %v390, %v401
      %v418 = vmul.f32 %v393, %v401
      %v419 = vld [vmem:[%s3] sm:$0x1]
      %v421 = vlaneseq
      %v422 = vshrl.u32 %v421, 7
      %v423 = vsub.s32 0, %v422
      %v424 = vrot.slane %v419, %v423
      %v426 = vadd.f32 %v403, %v424
      %v427 = vadd.f32 %v404, %v424
      %v428 = vadd.f32 %v405, %v424
      %v429 = vadd.f32 %v406, %v424
      %v430 = vadd.f32 %v407, %v424
      %v431 = vadd.f32 %v408, %v424
      %v432 = vadd.f32 %v409, %v424
      %v433 = vadd.f32 %v410, %v424
      %v434 = vadd.f32 %v411, %v424
      %v435 = vadd.f32 %v412, %v424
      %v436 = vadd.f32 %v413, %v424
      %v437 = vadd.f32 %v414, %v424
      %v438 = vadd.f32 %v415, %v424
      %v439 = vadd.f32 %v416, %v424
      %v440 = vadd.f32 %v417, %v424
      %v441 = vadd.f32 %v418, %v424
      %v442 = vmax.f32 %v426, 0.0
      %v443 = vmax.f32 %v427, 0.0
      %v444 = vmax.f32 %v428, 0.0
      %v445 = vmax.f32 %v429, 0.0
      %v446 = vmax.f32 %v430, 0.0
      %v447 = vmax.f32 %v431, 0.0
      %v448 = vmax.f32 %v432, 0.0
      %v449 = vmax.f32 %v433, 0.0
      %v450 = vmax.f32 %v434, 0.0
      %v451 = vmax.f32 %v435, 0.0
      %v452 = vmax.f32 %v436, 0.0
      %v453 = vmax.f32 %v437, 0.0
      %v454 = vmax.f32 %v438, 0.0
      %v455 = vmax.f32 %v439, 0.0
      %v456 = vmax.f32 %v440, 0.0
      %v457 = vmax.f32 %v441, 0.0
      %v458 = vpack.c.bf16 %v443, %v442
      %v459 = vpack.c.bf16 %v445, %v444
      %v460 = vpack.c.bf16 %v447, %v446
      %v461 = vpack.c.bf16 %v449, %v448
      %v462 = vpack.c.bf16 %v451, %v450
      %v463 = vpack.c.bf16 %v453, %v452
      %v464 = vpack.c.bf16 %v455, %v454
      %v465 = vpack.c.bf16 %v457, %v456
      %v474 = vunpack.c.l.b16 %v458
      %v475 = vunpack.c.h.b16 %v458
      %v476 = vunpack.c.l.b16 %v459
      %v477 = vunpack.c.h.b16 %v459
      %v478 = vunpack.c.l.b16 %v460
      %v479 = vunpack.c.h.b16 %v460
      %v480 = vunpack.c.l.b16 %v461
      %v481 = vunpack.c.h.b16 %v461
      %v482 = vunpack.c.l.b16 %v462
      %v483 = vunpack.c.h.b16 %v462
      %v484 = vunpack.c.l.b16 %v463
      %v485 = vunpack.c.h.b16 %v463
      %v486 = vunpack.c.l.b16 %v464
      %v487 = vunpack.c.h.b16 %v464
      %v488 = vunpack.c.l.b16 %v465
      %v489 = vunpack.c.h.b16 %v465
      %v490 = vpack.c.b16 %v474, %v474
      %v491 = vpack.c.b16 %v475, %v475
      %v492 = vpack.c.b16 %v476, %v476
      %v493 = vpack.c.b16 %v477, %v477
      %v494 = vpack.c.b16 %v478, %v478
      %v495 = vpack.c.b16 %v479, %v479
      %v496 = vpack.c.b16 %v480, %v480
      %v497 = vpack.c.b16 %v481, %v481
      %v498 = vpack.c.b16 %v482, %v482
      %v499 = vpack.c.b16 %v483, %v483
      %v500 = vpack.c.b16 %v484, %v484
      %v501 = vpack.c.b16 %v485, %v485
      %v502 = vpack.c.b16 %v486, %v486
      %v503 = vpack.c.b16 %v487, %v487
      %v504 = vpack.c.b16 %v488, %v488
      %v505 = vpack.c.b16 %v489, %v489
      %vm522 = vcmask 257024
      %523 = vst.msk [vmem:[%s199] sm:$0xf] %vm522, %v490
      %524 = vst.msk [vmem:[%s199 + $0x4] sm:$0xf] %vm522, %v491
      %525 = vst.msk [vmem:[%s199 + $0x8] sm:$0xf] %vm522, %v492
      %526 = vst.msk [vmem:[%s199 + $0xc] sm:$0xf] %vm522, %v493
      %527 = vst.msk [vmem:[%s199 + $0x10] sm:$0xf] %vm522, %v494
      %528 = vst.msk [vmem:[%s199 + $0x14] sm:$0xf] %vm522, %v495
      %529 = vst.msk [vmem:[%s199 + $0x18] sm:$0xf] %vm522, %v496
      %530 = vst.msk [vmem:[%s199 + $0x1c] sm:$0xf] %vm522, %v497
      %531 = vst.msk [vmem:[%s199 + $0x20] sm:$0xf] %vm522, %v498
      %532 = vst.msk [vmem:[%s199 + $0x24] sm:$0xf] %vm522, %v499
      %533 = vst.msk [vmem:[%s199 + $0x28] sm:$0xf] %vm522, %v500
      %534 = vst.msk [vmem:[%s199 + $0x2c] sm:$0xf] %vm522, %v501
      %535 = vst.msk [vmem:[%s199 + $0x30] sm:$0xf] %vm522, %v502
      %536 = vst.msk [vmem:[%s199 + $0x34] sm:$0xf] %vm522, %v503
      %537 = vst.msk [vmem:[%s199 + $0x38] sm:$0xf] %vm522, %v504
      %538 = vst.msk [vmem:[%s199 + $0x3c] sm:$0xf] %vm522, %v505
      %s539 = smul.u32 16, %s15
      %p540 = scmp.lt.s32.totalorder %s539, 63
      %s541 = scalar_select %p540, %s539, 63
      %s542 = smul.addr %s541, 4
      %s543 = scalar_lea.vmem %s4, %s542
      // Predicated region
      $region37: #{tpu_custom_call.1} parent=35 // pred_check
        %p544 = pneg %p122
      $region38: #{tpu_custom_call.1} parent=35 // pred_check_branch
        %546 = sbr.rel (%p544) target = $region40
      $region39: #{tpu_custom_call.1} parent=35 // pred_region
        %s547 = smul.u32 16, %s15
      $region40: #{tpu_custom_call.1} parent=35 // pred_fallthru
        _
    $region36: #{tpu_custom_call.1} parent=5 // pred_fallthru
      _
    %p548 = scmp.le.s32.totalorder 2, %s10
    // Predicated region
    $region41: #{tpu_custom_call.1} parent=5 // pred_check
      %p549 = pneg %p548
    $region42: #{tpu_custom_call.1} parent=5 // pred_check_branch
      %551 = sbr.rel (%p549) target = $region44
    $region43: #{tpu_custom_call.1} parent=5 // pred_region
      %s552 = ssub.s32 %s10, 2
      // Predicated region
      $region45: #{tpu_custom_call.1} parent=43 // pred_check
        %p553 = pneg %p128
      $region46: #{tpu_custom_call.1} parent=43 // pred_check_branch
        %555 = sbr.rel (%p553) target = $region48
      $region47: #{tpu_custom_call.1} parent=43 // pred_region
        %s556 = smul.u32 16, %s16
        %p557 = scmp.lt.s32.totalorder %s556, 63
        %s558 = scalar_select %p557, %s556, 63
        %s559 = smul.addr %s558, 4
        %s560 = scalar_lea.vmem %s4, %s559
      $region48: #{tpu_custom_call.1} parent=43 // pred_fallthru
        _
    $region44: #{tpu_custom_call.1} parent=5 // pred_fallthru
      _
  $region6: #{tpu_custom_call.1} parent=0 // loop_footer
    %s14 = sadd.s32 1, %s10
  $region7: #{tpu_custom_call.1} parent=0 // loop_footer_branch
    %9 = sbr.rel target = $region3
  $region8: #{tpu_custom_call.1} parent=0 // loop_exit
    _

</llo_original>
